<compile_context>
chip_gen: v7x
topology: tpu7x:2x2x1
jax: 0.10.0
libtpu: 0.0.40
codegen_flags: <defaults>
</compile_context>

<pallas_src>
import jax
import jax.numpy as jnp
from jax.experimental import pallas as pl
from jax.experimental.pallas import tpu as pltpu


_LANE = 128
_SLACK_BYTES = 2 << 20
_FAST_PATH_BYTES = 256 << 10  # below this, plain XLA add wins (launch overhead)


def _round_up(v, m):
    return ((v + m - 1) // m) * m


def _tpu_vmem_capacity_bytes():
    """Best-effort VMEM capacity query; conservative (v7x) fallback."""
    try:
        info = pltpu.get_tpu_info()
        for attr in ("vmem_capacity_bytes", "vmem_bytes", "vmem_size_bytes"):
            v = getattr(info, attr, None)
            if v:
                return int(v)
    except Exception:
        pass
    return 64 << 20


def _linear_pe_kernel(x_ref, pe_ref, o_ref):
    # x_ref/o_ref: (bt, wc) tile of the flattened (B, S*D) view.
    # pe_ref: (1, >=wc) tile of the flattened pe table; its first wc columns
    # line up with this x tile's columns (identical row-major flattening).
    w = x_ref.shape[-1]
    o_ref[...] = (x_ref[...] + pe_ref[:, :w]).astype(o_ref.dtype)


def linear_pe_forward(x, pe, filters, *, donate_x=False, force_kernel=False):
    """Forward pass of LinearPE (eval mode): (x + pe[:, :S, :], filters).

    x: (B, S, D);  pe: (1, input_len + 1, D);  filters: passed through untouched.
    """
    B, S, D = x.shape
    if S > pe.shape[1]:
        raise ValueError(f"sequence length {S} exceeds pe table rows {pe.shape[1]}")
    if pe.shape[2] != D:
        raise ValueError("emb_dim mismatch between x and pe")

    # Cast pe to the activation dtype once in the wrapper: halves pe DMA bytes
    # and VMEM residency for bf16 activations, keeps the VPU add narrow.
    if pe.dtype != x.dtype:
        pe = pe.astype(x.dtype)

    itemsize = jnp.dtype(x.dtype).itemsize
    total_bytes = B * S * D * itemsize

    # Small-input fast path: kernel would be pure launch/DMA-setup overhead.
    if total_bytes < _FAST_PATH_BYTES and not force_kernel:
        return x + pe[:, :S, :], filters

    W = S * D
    pe_cols = pe.shape[1] * D

    # Free (metadata-only) reshapes to lane-dense 2-D views.
    x2 = x.reshape(B, W)
    pe2 = pe.reshape(1, pe_cols)

    # Generation-aware budgets.
    vmem_cap = _tpu_vmem_capacity_bytes()
    budget = min(vmem_cap * 3 // 4, 96 << 20)          # 48 MiB on v7x, 96 on v5e/v6e
    target = (8 << 20) if vmem_cap >= (96 << 20) else (6 << 20)   # per-buffer tile

    # Native packed sublane count: f32 -> 8, bf16 -> 16, int8/fp8 -> 32.
    sub = max(8, 32 // itemsize)

    # ---- choose (bt, wc) ----------------------------------------------------
    bt0 = B if B <= sub else sub
    wc_cap = max(_LANE, (target // max(1, bt0 * itemsize)) // _LANE * _LANE)

    if wc_cap >= W:
        # A whole flattened (S*D) row fits the tile budget: tile over batch only.
        wc = W
        rows_fit = max(1, target // max(1, W * itemsize))
        bt = B if rows_fit >= B else min(B, max(sub, (rows_fit // sub) * sub))
    else:
        # Row too wide for the budget: tile the column axis too (bt stays one
        # sublane group).  This replaces the old bt-floor overshoot.
        wc = wc_cap
        bt = bt0

    nc = pl.cdiv(W, wc)
    nr = pl.cdiv(B, bt)

    # Megacore (v7x): guarantee >= 2 blocks along a "parallel" axis when there
    # is enough work for a second TensorCore to matter.
    if nc * nr == 1 and total_bytes > (2 << 20):
        if B >= 2 * sub:
            bt = min(B, _round_up(pl.cdiv(B, 2), sub))
            nr = pl.cdiv(B, bt)
        elif W >= 2 * _LANE:
            wc = max(_LANE, _round_up(pl.cdiv(W, 2), _LANE))
            nc = pl.cdiv(W, wc)

    def _pe_block(wc_, nc_):
        # nc==1: pe resident with constant block index; keep only the
        # lane-aligned prefix covering the first S*D columns.
        return min(pe_cols, _round_up(wc_, _LANE)) if nc_ == 1 else wc_

    def _needed(bt_, wc_, nc_):
        # x + out double-buffered; pe conservatively counted double-buffered.
        return (2 * 2 * bt_ * wc_ + 2 * _pe_block(wc_, nc_)) * itemsize + _SLACK_BYTES

    # Shrink tiles until the pipeline fits the budget (never clamp the VMEM
    # limit below what the pipeline actually needs).
    while _needed(bt, wc, nc) > budget:
        if bt > sub:
            bt = max(sub, ((bt // 2) // sub) * sub)
            nr = pl.cdiv(B, bt)
        elif wc > _LANE:
            wc = max(_LANE, ((wc // 2) // _LANE) * _LANE)
            nc = pl.cdiv(W, wc)
        else:
            break

    pe_block = _pe_block(wc, nc)
    needed = _needed(bt, wc, nc)
    vmem_limit = int(min(max(needed, 8 << 20), budget))

    x_spec = pl.BlockSpec((bt, wc), lambda j, i: (i, j))
    out_spec = pl.BlockSpec((bt, wc), lambda j, i: (i, j))
    if nc == 1:
        # Constant block index -> pe DMA'd to VMEM once (effectively resident).
        pe_spec = pl.BlockSpec((1, pe_block), lambda j, i: (0, 0))
    else:
        # Depends only on the OUTER (column) axis -> re-fetched at most nc times.
        pe_spec = pl.BlockSpec((1, pe_block), lambda j, i: (0, j))

    call = pl.pallas_call(
        _linear_pe_kernel,
        out_shape=jax.ShapeDtypeStruct((B, W), x.dtype),
        grid_spec=pltpu.PrefetchScalarGridSpec(
            num_scalar_prefetch=0,
            grid=(nc, nr),                 # columns outer, batch rows inner
            in_specs=[x_spec, pe_spec],
            out_specs=out_spec,
        ),
        compiler_params=pltpu.CompilerParams(
            dimension_semantics=("parallel", "parallel"),
            vmem_limit_bytes=vmem_limit,
        ),
        # Mirrors the in-place flavor of the PyTorch op; only when the caller
        # actually donates x (otherwise XLA inserts a defensive copy).
        input_output_aliases={0: 0} if donate_x else {},
    )

    out = call(x2, pe2).reshape(B, S, D)

    # Dropout is identity in eval mode.
    return out, filters


if __name__ == "__main__":
    key = jax.random.PRNGKey(0)
    kx, kpe, kx2 = jax.random.split(key, 3)
    stddev = 0.02
    filters = jnp.ones((4,), dtype=jnp.float32)  # passed through untouched

    # --- test 1: module-default small shape, force the Pallas kernel path ----
    B, S, D = 2, 8, 32
    input_len = 16
    x = jax.random.normal(kx, (B, S, D), dtype=jnp.float32)
    # Deterministic parameter init mirroring __init__:
    # w = randn(input_len + 1, emb_dim) * stddev ** 0.5 ; pe = w[None]
    pe = (jax.random.normal(kpe, (input_len + 1, D), dtype=jnp.float32)
          * (stddev ** 0.5))[None, :, :]

    out, filters_out = linear_pe_forward(x, pe, filters, force_kernel=True)
    jax.block_until_ready(out)
    jax.block_until_ready(filters_out)

    ref = x + pe[:, :S, :]
    assert out.shape == (B, S, D)
    assert jnp.allclose(out, ref, atol=1e-6), "f32 kernel mismatch vs reference"
    assert jnp.allclose(filters_out, filters), "filters must pass through unchanged"

    # Fast path (same shape, kernel not forced) must agree as well.
    out_fast, _ = linear_pe_forward(x, pe, filters)
    jax.block_until_ready(out_fast)
    assert jnp.allclose(out_fast, ref, atol=1e-6), "fast path mismatch vs reference"

    # --- test 2: bf16 activations with f32 pe (wrapper casts pe once) --------
    B2, S2, D2 = 8, 128, 256
    input_len2 = 128
    x_b = jax.random.normal(kx2, (B2, S2, D2), dtype=jnp.bfloat16)
    pe_b = (jax.random.normal(kpe, (input_len2 + 1, D2), dtype=jnp.float32)
            * (stddev ** 0.5))[None, :, :]
    out_b, _ = linear_pe_forward(x_b, pe_b, filters, force_kernel=True)
    jax.block_until_ready(out_b)
    ref_b = x_b + pe_b[:, :S2, :].astype(jnp.bfloat16)
    assert out_b.dtype == jnp.bfloat16
    assert jnp.allclose(out_b.astype(jnp.float32), ref_b.astype(jnp.float32),
                        atol=1e-2, rtol=1e-2), "bf16 kernel mismatch vs reference"

    print("KERNEL_OK")
</pallas_src>

<mosaic_0001>
module attributes {stable_mosaic.version = 11 : i64} {
  func.func @_linear_pe_kernel(%arg0: i32, %arg1: i32, %arg2: memref<2x256xf32, #tpu.memory_space<vmem>>, %arg3: memref<1x256xf32, #tpu.memory_space<vmem>>, %arg4: memref<2x256xf32, #tpu.memory_space<vmem>>) attributes {dimension_semantics = [#tpu.dimension_semantics<parallel>, #tpu.dimension_semantics<parallel>], iteration_bounds = array<i64: 1, 1>, scalar_prefetch = 0 : i64, scratch_operands = 0 : i64, tpu.core_type = #tpu.core_type<tc>, window_params = [{transform_indices = @transform_0, window_bounds = array<i64: 2, 256>}, {transform_indices = @transform_1, window_bounds = array<i64: 1, 256>}, {transform_indices = @transform_2, window_bounds = array<i64: 2, 256>}]} {
    %c0 = arith.constant 0 : index
    %c0_0 = arith.constant 0 : index
    %0 = vector.load %arg2[%c0, %c0_0] : memref<2x256xf32, #tpu.memory_space<vmem>>, vector<2x256xf32>
    %c0_1 = arith.constant 0 : index
    %c0_2 = arith.constant 0 : index
    %1 = vector.load %arg3[%c0_1, %c0_2] : memref<1x256xf32, #tpu.memory_space<vmem>>, vector<1x256xf32>
    %2 = vector.broadcast %1 : vector<1x256xf32> to vector<2x256xf32>
    %3 = arith.addf %0, %2 : vector<2x256xf32>
    %c0_3 = arith.constant 0 : index
    %c0_4 = arith.constant 0 : index
    %4 = vector.load %arg4[%c0_3, %c0_4] : memref<2x256xf32, #tpu.memory_space<vmem>>, vector<2x256xf32>
    tpu.vector_store %arg4[%c0_3, %c0_4], %3 {strides = array<i32>} : memref<2x256xf32, #tpu.memory_space<vmem>>, vector<2x256xf32>,
    return
  }
  func.func @transform_0(%arg0: i32, %arg1: i32) -> (i32, i32) {
    %c0_i32 = arith.constant 0 : i32
    return %arg1, %arg0 : i32, i32
  }
  func.func @transform_1(%arg0: i32, %arg1: i32) -> (i32, i32) {
    %c0_i32 = arith.constant 0 : i32
    %c0_i32_0 = arith.constant 0 : i32
    %c0_i32_1 = arith.constant 0 : i32
    return %c0_i32, %c0_i32_0 : i32, i32
  }
  func.func @transform_2(%arg0: i32, %arg1: i32) -> (i32, i32) {
    %c0_i32 = arith.constant 0 : i32
    return %arg1, %arg0 : i32, i32
  }
}

</mosaic_0001>

<llo_original>
// kernel: tpu_custom_call.1
$region0: #{tpu_custom_call.1}
  #allocation0 [shape = 'u32[]', space=smem, size = 0x4, offset = 0x4, fixed_abs, tag = 'smem constant byte address 0x4 - core index']
  #allocation1 [shape = 'u32[144,128]{1,0:T(1,128)}', space=vmem, size = 0x12000, scoped, tag = 'internal scratch']
  %s0 = inlined_call_operand.hbm [shape: f32[2,256], index: 0, kind: input, shape index: {}]
  %s1 = inlined_call_operand.hbm [shape: f32[1,544], index: 1, kind: input, shape index: {}]
  %s2 = inlined_call_operand.hbm [shape: f32[2,256], index: 2, kind: output, shape index: {}]
  %s3 = sld [smem:[#allocation0]]
  $region26: #{tpu_custom_call.1} parent=0
    _
  %s5 = ssub.s32 1, %s3
  %s6 = scalar_select 0, %s5, %s3
  $region1: #{tpu_custom_call.1} parent=0
    #allocation2 [shape = 'u8[2048]{0}', space=vmem, size = 0x800, scoped, tag = 'input window, operand 0, single buffered']
    #allocation3 [shape = 's32[1]{0}', space=sflag, size = 0x4, scoped, tag = 'scoped memory for tpu_custom_call.1']
    #allocation4 [shape = 's32[1]{0}', space=sflag, size = 0x4, scoped, tag = 'scoped memory for tpu_custom_call.1']
    #allocation5 [shape = 'u8[1024]{0}', space=vmem, size = 0x400, scoped, tag = 'input window, operand 1, single buffered']
    #allocation6 [shape = 's32[1]{0}', space=sflag, size = 0x4, scoped, tag = 'scoped memory for tpu_custom_call.1']
    #allocation7 [shape = 'u8[2048]{0}', space=vmem, size = 0x800, scoped, tag = 'output window, operand 0, single buffered']
    %7 = vsyncpa [#allocation3], 0
    %8 = vsyncpa [#allocation6], 0
    %9 = vsyncpa [#allocation4], 0
    // Predicated region
    $region2: #{tpu_custom_call.1} parent=1 // pred_check
      _
    $region3: #{tpu_custom_call.1} parent=1 // pred_check_branch
      %11 = sbr.rel (0) target = $region5
    $region4: #{tpu_custom_call.1} parent=1 // pred_region
      %s13 = ssub.s32 64, 64
      %14 = vsyncadd [#allocation3], %s13
      %s16 = sshll.u32 [#allocation2], 4
      %s17 = int_to_ptr.vmem [resolvable:$true] %s16
      %19 = dma.hbm_to_vmem [thread:$0]  %s0, 64, %s17, [#allocation3]
    $region5: #{tpu_custom_call.1} parent=1 // pred_fallthru
      _
    // Predicated region
    $region6: #{tpu_custom_call.1} parent=1 // pred_check
      _
    $region7: #{tpu_custom_call.1} parent=1 // pred_check_branch
      %21 = sbr.rel (0) target = $region9
    $region8: #{tpu_custom_call.1} parent=1 // pred_region
      %s23 = ssub.s32 32, 32
      %24 = vsyncadd [#allocation6], %s23
      %s26 = sshll.u32 [#allocation5], 4
      %s27 = int_to_ptr.vmem [resolvable:$true] %s26
      %29 = dma.hbm_to_vmem [thread:$0]  %s1, 32, %s27, [#allocation6]
    $region9: #{tpu_custom_call.1} parent=1 // pred_fallthru
      _
    // Predicated region
    $region10: #{tpu_custom_call.1} parent=1 // pred_check
      _
    $region11: #{tpu_custom_call.1} parent=1 // pred_check_branch
      %31 = sbr.rel (0) target = $region13
    $region12: #{tpu_custom_call.1} parent=1 // pred_region
      %32 = dma.done [#allocation3], 64
    $region13: #{tpu_custom_call.1} parent=1 // pred_fallthru
      _
    // Predicated region
    $region14: #{tpu_custom_call.1} parent=1 // pred_check
      _
    $region15: #{tpu_custom_call.1} parent=1 // pred_check_branch
      %34 = sbr.rel (0) target = $region17
    $region16: #{tpu_custom_call.1} parent=1 // pred_region
      %35 = dma.done [#allocation6], 32
    $region17: #{tpu_custom_call.1} parent=1 // pred_fallthru
      _
    %v36 = vld [vmem:[#allocation2] sm:$0xf]
    %v37 = vld [vmem:[#allocation5] sm:$0x3]
    %v39 = vlaneseq
    %v40 = vshrl.u32 %v39, 7
    %v41 = vsub.s32 0, %v40
    %v42 = vrot.slane %v37, %v41
    %v43 = vlaneseq
    %v44 = vshrl.u32 %v43, 7
    %v45 = vsub.s32 1, %v44
    %v46 = vrot.slane %v37, %v45
    %v47 = vcombine.low %v42, %v46
    %v49 = vunpack.c.l.s4 1983009808
    %v50 = vunpack.c.0.s8 %v49
    %v51 = vlaneseq
    %v52 = vshrl.u32 %v51, 7
    %v53 = vsub.s32 %v50, %v52
    %v54 = vrot.slane %v47, %v53
    %v56 = vadd.f32 %v36, %v54
    %57 = vst [vmem:[#allocation7] sm:$0xf] %v56
    // Predicated region
    $region18: #{tpu_custom_call.1} parent=1 // pred_check
      _
    $region19: #{tpu_custom_call.1} parent=1 // pred_check_branch
      %59 = sbr.rel (0) target = $region21
    $region20: #{tpu_custom_call.1} parent=1 // pred_region
      %s61 = ssub.s32 64, 64
      %62 = vsyncadd [#allocation4], %s61
      %s64 = sshll.u32 [#allocation7], 4
      %s65 = int_to_ptr.vmem [resolvable:$true] %s64
      %67 = dma.vmem_to_hbm [thread:$0]  %s65, 64, %s2, [#allocation4]
    $region21: #{tpu_custom_call.1} parent=1 // pred_fallthru
      _
    // Predicated region
    $region22: #{tpu_custom_call.1} parent=1 // pred_check
      _
    $region23: #{tpu_custom_call.1} parent=1 // pred_check_branch
      %69 = sbr.rel (0) target = $region25
    $region24: #{tpu_custom_call.1} parent=1 // pred_region
      %70 = dma.done [#allocation4], 64
    $region25: #{tpu_custom_call.1} parent=1 // pred_fallthru
      _
    %71 = vsyncpa [#allocation3], 1
    %72 = vsyncpa [#allocation6], 1
    %73 = vsyncpa [#allocation4], 1

</llo_original>
